<compile_context>
chip_gen: v7x
topology: tpu7x:2x2x1
jax: 0.10.0
libtpu: 0.0.40
codegen_flags: <defaults>
</compile_context>

<pallas_src>
import jax
import jax.numpy as jnp
from jax.experimental import pallas as pl
from jax.experimental.pallas import tpu as pltpu

BN_EPS = 1e-5


# ----------------------------- fused Pallas kernel --------------------------

def _make_kernel(H, W, C, TH):
    TH2 = TH + 2              # stage-1 rows computed per tile (+-1 halo row)
    S_IN = (W + 4) * C        # input row-slab width   (cols padded by 2)
    S_MID = (W + 2) * C       # stage-1 row-slab width (cols padded by 1)
    S_OUT = W * C             # output row-slab width

    def kernel(x_ref, wb1_ref, b1_ref, wb2_ref, b2_ref, alpha_ref, o_ref):
        # x_ref  : (1, 1, TH+4, S_IN)  bf16  input row slabs incl. halo
        # wb1_ref: (3, S_IN, S_MID)    bf16  banded grouped3x3 . 1x1 . BN1-scale
        # wb2_ref: (3, S_MID, S_OUT)   bf16  banded grouped3x3 . 1x1 . BN2-scale
        # b1/b2  : (1, S_MID)/(1, S_OUT) f32 per-lane (channel-tiled) biases
        # alpha  : (2,) f32 in SMEM          [PReLU1 slope, final PReLU slope]
        # o_ref  : (1, 1, TH, S_OUT)   f32   lane-dense output slab
        t = pl.program_id(1)                                  # row-tile index
        x = x_ref[0, 0, :, :]                                 # (TH+4, S_IN)

        # ---- stage 1: 3 banded matmuls (one per vertical tap) + bias + PReLU ----
        y1 = jnp.dot(x[0:TH2, :], wb1_ref[0], preferred_element_type=jnp.float32)
        y1 += jnp.dot(x[1:TH2 + 1, :], wb1_ref[1], preferred_element_type=jnp.float32)
        y1 += jnp.dot(x[2:TH2 + 2, :], wb1_ref[2], preferred_element_type=jnp.float32)
        y1 = y1 + b1_ref[...]
        a1 = alpha_ref[0]
        y1 = jnp.where(y1 > 0, y1, a1 * y1)

        # Zero the halo rows/cols that lie outside the image: they are the zero
        # padding of stage-2's conv, NOT stage-1 evaluated on padded input.
        rows = jax.lax.broadcasted_iota(jnp.int32, (TH2, S_MID), 0)
        lanes = jax.lax.broadcasted_iota(jnp.int32, (TH2, S_MID), 1)
        r = t * TH - 1 + rows
        ok = (r >= 0) & (r < H) & (lanes >= C) & (lanes < (W + 1) * C)
        y1 = jnp.where(ok, y1, 0.0).astype(jnp.bfloat16)

        # ---- stage 2: 3 banded matmuls + bias + residual + final PReLU -----------
        y2 = jnp.dot(y1[0:TH, :], wb2_ref[0], preferred_element_type=jnp.float32)
        y2 += jnp.dot(y1[1:TH + 1, :], wb2_ref[1], preferred_element_type=jnp.float32)
        y2 += jnp.dot(y1[2:TH + 2, :], wb2_ref[2], preferred_element_type=jnp.float32)
        res = x[2:TH + 2, 2 * C:2 * C + S_OUT].astype(jnp.float32)  # residual = input
        y2 = y2 + b2_ref[...] + res
        a2 = alpha_ref[1]
        o_ref[0, 0, :, :] = jnp.where(y2 > 0, y2, a2 * y2)

    return kernel


# ----------------------------- host-side helpers ----------------------------

def _choose_th(H):
    # Prefer >=2 row tiles (>=2 grid steps per TensorCore on v7x megacore, and the
    # DMA pipeline has something to overlap); tiles carry a cheap 2-row halo.
    for th in (256, 128, 64, 32, 16, 8):
        if H % th == 0 and H // th >= 2:
            return th
    return H


def _blockdiag_3x3(w_pt, groups):
    """Grouped OIHW 3x3 weight -> dense block-diagonal (9*Cin, Cout), tap-major rows."""
    Cout, cin_g, _, _ = w_pt.shape
    cout_g = Cout // groups
    Cin = cin_g * groups
    w = w_pt.reshape(groups, cout_g, cin_g, 3, 3)
    w = jnp.transpose(w, (3, 4, 2, 0, 1)).reshape(9, cin_g, groups, cout_g)
    eye = jnp.eye(groups, dtype=w.dtype)
    w_bd = jnp.einsum('tcgo,hg->thcgo', w, eye)
    return w_bd.reshape(9 * Cin, Cout)


def _pw_weight(w_pt):
    Cout, Cin = w_pt.shape[0], w_pt.shape[1]
    return jnp.transpose(w_pt.reshape(Cout, Cin), (1, 0))


def _fold_bn(bn):
    scale = bn['gamma'] / jnp.sqrt(bn['var'] + BN_EPS)
    bias = bn['beta'] - bn['mean'] * scale
    return scale, bias


def _banded(w_eff, n_in, n_out):
    """w_eff: (3,3,Cin,Cout). Returns (3, n_in*Cin, n_out*Cout) banded matrices
    B[kh][(u+kw)*Cin+ci, u*Cout+co] = w_eff[kh,kw,ci,co], so that
        out_row = sum_kh  in_row[kh] @ B[kh]
    implements a 3x3 conv on lane-dense row slabs (output col u reads input
    cols u..u+2 of the padded slab)."""
    mats = []
    for kh in range(3):
        m = sum(jnp.kron(jnp.eye(n_out, n_in, k=kw).T, w_eff[kh, kw]) for kw in range(3))
        mats.append(m)
    return jnp.stack(mats)


def pack_params(p, W):
    """Fold the 1x1 convs + BatchNorm scales into the grouped-3x3 weights (in f32),
    then lay them out as width-specific banded slab weights for the fused kernel."""
    G = p['groups']
    C = p['w2'].shape[0]
    s1, b1 = _fold_bn(p['bn1'])
    s2, b2 = _fold_bn(p['bn2'])
    w_eff1 = ((_blockdiag_3x3(p['w1'], G) @ _pw_weight(p['w2'])) * s1[None, :]
              ).reshape(3, 3, C, C)
    w_eff2 = ((_blockdiag_3x3(p['w3'], G) @ _pw_weight(p['w4'])) * s2[None, :]
              ).reshape(3, 3, C, C)
    return dict(
        wb1=_banded(w_eff1, W + 4, W + 2).astype(jnp.bfloat16),   # (3,(W+4)C,(W+2)C)
        wb2=_banded(w_eff2, W + 2, W).astype(jnp.bfloat16),       # (3,(W+2)C, W*C)
        b1=jnp.tile(b1, W + 2).reshape(1, (W + 2) * C).astype(jnp.float32),
        b2=jnp.tile(b2, W).reshape(1, W * C).astype(jnp.float32),
        alphas=jnp.concatenate([p['alpha1'], p['alpha_out']]).astype(jnp.float32),
    )


def normal_block_pallas(x_nchw, pk):
    B, C, H, W = x_nchw.shape
    TH = _choose_th(H)
    nT = H // TH

    # NCHW -> NHWC -> pad 2 rows/cols -> lane-dense row slabs (row, (W+4)*C)
    x = jnp.transpose(x_nchw, (0, 2, 3, 1))
    xp = jnp.pad(x, ((0, 0), (2, 2), (2, 2), (0, 0))).astype(jnp.bfloat16)
    xp = xp.reshape(B, H + 4, (W + 4) * C)
    # overlapping row tiles with a 2-row halo (stage-1 halo rows are recomputed)
    chunks = jnp.stack([xp[:, t * TH:t * TH + TH + 4, :] for t in range(nT)], axis=1)

    kernel = _make_kernel(H, W, C, TH)
    out = pl.pallas_call(
        kernel,
        out_shape=jax.ShapeDtypeStruct((B, nT, TH, W * C), jnp.float32),
        grid=(B, nT),
        in_specs=[
            pl.BlockSpec((1, 1, TH + 4, (W + 4) * C), lambda b, t: (b, t, 0, 0)),
            pl.BlockSpec((3, (W + 4) * C, (W + 2) * C), lambda b, t: (0, 0, 0)),
            pl.BlockSpec((1, (W + 2) * C), lambda b, t: (0, 0)),
            pl.BlockSpec((3, (W + 2) * C, W * C), lambda b, t: (0, 0, 0)),
            pl.BlockSpec((1, W * C), lambda b, t: (0, 0)),
            pl.BlockSpec(memory_space=pltpu.MemorySpace.SMEM),
        ],
        out_specs=pl.BlockSpec((1, 1, TH, W * C), lambda b, t: (b, t, 0, 0)),
        compiler_params=pltpu.CompilerParams(
            dimension_semantics=("parallel", "parallel")),
    )(chunks, pk['wb1'], pk['b1'], pk['wb2'], pk['b2'], pk['alphas'])

    out = out.reshape(B, H, W, C)
    return jnp.transpose(out, (0, 3, 1, 2))


# ----------------------------- parameters -----------------------------------

def _bn_params(key, c):
    k1, k2, k3, k4 = jax.random.split(key, 4)
    return dict(
        gamma=jax.random.uniform(k1, (c,), jnp.float32, 0.5, 1.5),
        beta=jax.random.normal(k2, (c,), jnp.float32) * 0.1,
        mean=jax.random.normal(k3, (c,), jnp.float32) * 0.1,
        var=jax.random.uniform(k4, (c,), jnp.float32, 0.5, 1.5),
    )


def init_params(key, chan, group_size):
    G = chan // group_size
    ks = jax.random.split(key, 6)
    w = lambda k, shape: jax.random.normal(k, shape, jnp.float32) * 0.1
    return dict(
        groups=G,
        w1=w(ks[0], (2 * chan, chan // G, 3, 3)),      # grouped 3x3, no norm/activ
        w2=w(ks[1], (chan, 2 * chan, 1, 1)),           # 1x1, BN + PReLU
        bn1=_bn_params(ks[2], chan),
        alpha1=jnp.full((1,), 0.25, jnp.float32),
        w3=w(ks[3], (2 * chan, chan // G, 3, 3)),      # grouped 3x3, no norm/activ
        w4=w(ks[4], (chan, 2 * chan, 1, 1)),           # 1x1, BN, no activ
        bn2=_bn_params(ks[5], chan),
        alpha_out=jnp.full((1,), 0.25, jnp.float32),   # final PReLU after residual
    )


# ----------------------------- pure-JAX reference ---------------------------

def ref_forward(x, p):
    def conv(x, w, stride, padding, groups):
        return jax.lax.conv_general_dilated(
            x, w, (stride, stride), ((padding, padding), (padding, padding)),
            dimension_numbers=('NCHW', 'OIHW', 'NCHW'), feature_group_count=groups)

    def bn(x, b):
        sh = (1, -1, 1, 1)
        return ((x - b['mean'].reshape(sh)) / jnp.sqrt(b['var'].reshape(sh) + BN_EPS)
                * b['gamma'].reshape(sh) + b['beta'].reshape(sh))

    def prelu(x, a):
        return jnp.where(x > 0, x, a[0] * x)

    G = p['groups']
    y = conv(x, p['w1'], 1, 1, G)
    y = prelu(bn(conv(y, p['w2'], 1, 0, 1), p['bn1']), p['alpha1'])
    y = conv(y, p['w3'], 1, 1, G)
    y = bn(conv(y, p['w4'], 1, 0, 1), p['bn2'])
    return prelu(y + x, p['alpha_out'])


# ----------------------------- main ------------------------------------------

if __name__ == "__main__":
    chan, group_size = 8, 4          # groups = 2
    B, H, W = 2, 16, 16              # W * chan = 128 -> fully lane-dense stores
    key = jax.random.PRNGKey(0)
    kx, kp = jax.random.split(key)
    x = jax.random.normal(kx, (B, chan, H, W), jnp.float32)
    params = init_params(kp, chan, group_size)
    packed = pack_params(params, W)

    out = normal_block_pallas(x, packed)
    out = jax.block_until_ready(out)

    assert out.shape == (B, chan, H, W), out.shape
    ref = ref_forward(x, params)
    err = float(jnp.max(jnp.abs(out - ref)))
    # single bf16 rounding per stage (weights folded in f32) -> tighter tolerance
    assert jnp.allclose(out, ref, atol=2e-2, rtol=2e-2), f"max abs err {err}"
    print("KERNEL_OK")
</pallas_src>

<mosaic_0001>
module attributes {stable_mosaic.version = 11 : i64} {
  func.func @kernel(%arg0: i32, %arg1: i32, %arg2: memref<1x1x12x160xbf16, #tpu.memory_space<vmem>>, %arg3: memref<3x160x144xbf16, #tpu.memory_space<vmem>>, %arg4: memref<1x144xf32, #tpu.memory_space<vmem>>, %arg5: memref<3x144x128xbf16, #tpu.memory_space<vmem>>, %arg6: memref<1x128xf32, #tpu.memory_space<vmem>>, %arg7: memref<2xf32, #tpu.memory_space<smem>>, %arg8: memref<1x1x8x128xf32, #tpu.memory_space<vmem>>) attributes {dimension_semantics = [#tpu.dimension_semantics<parallel>, #tpu.dimension_semantics<parallel>], iteration_bounds = array<i64: 2, 2>, scalar_prefetch = 0 : i64, scratch_operands = 0 : i64, tpu.core_type = #tpu.core_type<tc>, window_params = [{transform_indices = @transform_0, window_bounds = array<i64: 1, 1, 12, 160>}, {pipeline_mode = #tpu.pipeline_mode<synchronous>, transform_indices = @transform_1, window_bounds = array<i64: 3, 160, 144>}, {pipeline_mode = #tpu.pipeline_mode<synchronous>, transform_indices = @transform_2, window_bounds = array<i64: 1, 144>}, {pipeline_mode = #tpu.pipeline_mode<synchronous>, transform_indices = @transform_3, window_bounds = array<i64: 3, 144, 128>}, {pipeline_mode = #tpu.pipeline_mode<synchronous>, transform_indices = @transform_4, window_bounds = array<i64: 1, 128>}, {transform_indices = @transform_5, window_bounds = array<i64: 2>}, {transform_indices = @transform_6, window_bounds = array<i64: 1, 1, 8, 128>}]} {
    %c0 = arith.constant 0 : index
    %c0_0 = arith.constant 0 : index
    %c0_1 = arith.constant 0 : index
    %c0_2 = arith.constant 0 : index
    %0 = vector.load %arg2[%c0, %c0_0, %c0_1, %c0_2] : memref<1x1x12x160xbf16, #tpu.memory_space<vmem>>, vector<1x1x12x160xbf16>
    %1 = vector.shape_cast %0 : vector<1x1x12x160xbf16> to vector<12x160xbf16>
    %2 = vector.extract_strided_slice %1 {offsets = [0, 0], sizes = [10, 160], strides = [1, 1]} : vector<12x160xbf16> to vector<10x160xbf16>
    %c0_3 = arith.constant 0 : index
    %c0_4 = arith.constant 0 : index
    %c0_5 = arith.constant 0 : index
    %3 = vector.load %arg3[%c0_3, %c0_4, %c0_5] : memref<3x160x144xbf16, #tpu.memory_space<vmem>>, vector<1x160x144xbf16>
    %4 = vector.shape_cast %3 : vector<1x160x144xbf16> to vector<160x144xbf16>
    %cst = arith.constant dense<0.000000e+00> : vector<10x144xf32>
    %5 = tpu.matmul %2, %4, %cst {dimension_numbers = #tpu.dot_dimension_numbers<[1], [0], [0], [1], [0, 0, 1, 1], [], []>} : vector<10x160xbf16>, vector<160x144xbf16>, vector<10x144xf32> -> vector<10x144xf32>
    %6 = vector.extract_strided_slice %1 {offsets = [1, 0], sizes = [10, 160], strides = [1, 1]} : vector<12x160xbf16> to vector<10x160xbf16>
    %c1 = arith.constant 1 : index
    %c0_6 = arith.constant 0 : index
    %c0_7 = arith.constant 0 : index
    %7 = vector.load %arg3[%c1, %c0_6, %c0_7] : memref<3x160x144xbf16, #tpu.memory_space<vmem>>, vector<1x160x144xbf16>
    %8 = vector.shape_cast %7 : vector<1x160x144xbf16> to vector<160x144xbf16>
    %cst_8 = arith.constant dense<0.000000e+00> : vector<10x144xf32>
    %9 = tpu.matmul %6, %8, %cst_8 {dimension_numbers = #tpu.dot_dimension_numbers<[1], [0], [0], [1], [0, 0, 1, 1], [], []>} : vector<10x160xbf16>, vector<160x144xbf16>, vector<10x144xf32> -> vector<10x144xf32>
    %10 = arith.addf %5, %9 : vector<10x144xf32>
    %11 = vector.extract_strided_slice %1 {offsets = [2, 0], sizes = [10, 160], strides = [1, 1]} : vector<12x160xbf16> to vector<10x160xbf16>
    %c2 = arith.constant 2 : index
    %c0_9 = arith.constant 0 : index
    %c0_10 = arith.constant 0 : index
    %12 = vector.load %arg3[%c2, %c0_9, %c0_10] : memref<3x160x144xbf16, #tpu.memory_space<vmem>>, vector<1x160x144xbf16>
    %13 = vector.shape_cast %12 : vector<1x160x144xbf16> to vector<160x144xbf16>
    %cst_11 = arith.constant dense<0.000000e+00> : vector<10x144xf32>
    %14 = tpu.matmul %11, %13, %cst_11 {dimension_numbers = #tpu.dot_dimension_numbers<[1], [0], [0], [1], [0, 0, 1, 1], [], []>} : vector<10x160xbf16>, vector<160x144xbf16>, vector<10x144xf32> -> vector<10x144xf32>
    %15 = arith.addf %10, %14 : vector<10x144xf32>
    %c0_12 = arith.constant 0 : index
    %c0_13 = arith.constant 0 : index
    %16 = vector.load %arg4[%c0_12, %c0_13] : memref<1x144xf32, #tpu.memory_space<vmem>>, vector<1x144xf32>
    %17 = vector.broadcast %16 : vector<1x144xf32> to vector<10x144xf32>
    %18 = arith.addf %15, %17 : vector<10x144xf32>
    %c0_14 = arith.constant 0 : index
    %19 = memref.load %arg7[%c0_14] : memref<2xf32, #tpu.memory_space<smem>>
    %cst_15 = arith.constant 0.000000e+00 : f32
    %20 = vector.broadcast %cst_15 : f32 to vector<10x144xf32>
    %21 = arith.cmpf ogt, %18, %20 : vector<10x144xf32>
    %22 = vector.broadcast %19 : f32 to vector<10x144xf32>
    %23 = arith.mulf %22, %18 : vector<10x144xf32>
    %24 = arith.select %21, %18, %23 : vector<10x144xi1>, vector<10x144xf32>
    %25 = tpu.iota {dimensions = array<i32: 0>} : vector<10x144xi32>
    %26 = tpu.iota {dimensions = array<i32: 1>} : vector<10x144xi32>
    %c8_i32 = arith.constant 8 : i32
    %27 = arith.muli %arg1, %c8_i32 : i32
    %c1_i32 = arith.constant 1 : i32
    %28 = arith.subi %27, %c1_i32 : i32
    %29 = vector.broadcast %28 : i32 to vector<10x144xi32>
    %30 = arith.addi %29, %25 : vector<10x144xi32>
    %c0_i32 = arith.constant 0 : i32
    %31 = vector.broadcast %c0_i32 : i32 to vector<10x144xi32>
    %32 = arith.cmpi sge, %30, %31 : vector<10x144xi32>
    %c16_i32 = arith.constant 16 : i32
    %33 = vector.broadcast %c16_i32 : i32 to vector<10x144xi32>
    %34 = arith.cmpi slt, %30, %33 : vector<10x144xi32>
    %35 = arith.andi %32, %34 : vector<10x144xi1>
    %c8_i32_16 = arith.constant 8 : i32
    %36 = vector.broadcast %c8_i32_16 : i32 to vector<10x144xi32>
    %37 = arith.cmpi sge, %26, %36 : vector<10x144xi32>
    %38 = arith.andi %35, %37 : vector<10x144xi1>
    %c136_i32 = arith.constant 136 : i32
    %39 = vector.broadcast %c136_i32 : i32 to vector<10x144xi32>
    %40 = arith.cmpi slt, %26, %39 : vector<10x144xi32>
    %41 = arith.andi %38, %40 : vector<10x144xi1>
    %cst_17 = arith.constant 0.000000e+00 : f32
    %42 = vector.broadcast %cst_17 : f32 to vector<10x144xf32>
    %43 = arith.select %41, %24, %42 : vector<10x144xi1>, vector<10x144xf32>
    %44 = arith.truncf %43 : vector<10x144xf32> to vector<10x144xbf16>
    %45 = vector.extract_strided_slice %44 {offsets = [0, 0], sizes = [8, 144], strides = [1, 1]} : vector<10x144xbf16> to vector<8x144xbf16>
    %c0_18 = arith.constant 0 : index
    %c0_19 = arith.constant 0 : index
    %c0_20 = arith.constant 0 : index
    %46 = vector.load %arg5[%c0_18, %c0_19, %c0_20] : memref<3x144x128xbf16, #tpu.memory_space<vmem>>, vector<1x144x128xbf16>
    %47 = vector.shape_cast %46 : vector<1x144x128xbf16> to vector<144x128xbf16>
    %cst_21 = arith.constant dense<0.000000e+00> : vector<8x128xf32>
    %48 = tpu.matmul %45, %47, %cst_21 {dimension_numbers = #tpu.dot_dimension_numbers<[1], [0], [0], [1], [0, 0, 1, 1], [], []>} : vector<8x144xbf16>, vector<144x128xbf16>, vector<8x128xf32> -> vector<8x128xf32>
    %49 = vector.extract_strided_slice %44 {offsets = [1, 0], sizes = [8, 144], strides = [1, 1]} : vector<10x144xbf16> to vector<8x144xbf16>
    %c1_22 = arith.constant 1 : index
    %c0_23 = arith.constant 0 : index
    %c0_24 = arith.constant 0 : index
    %50 = vector.load %arg5[%c1_22, %c0_23, %c0_24] : memref<3x144x128xbf16, #tpu.memory_space<vmem>>, vector<1x144x128xbf16>
    %51 = vector.shape_cast %50 : vector<1x144x128xbf16> to vector<144x128xbf16>
    %cst_25 = arith.constant dense<0.000000e+00> : vector<8x128xf32>
    %52 = tpu.matmul %49, %51, %cst_25 {dimension_numbers = #tpu.dot_dimension_numbers<[1], [0], [0], [1], [0, 0, 1, 1], [], []>} : vector<8x144xbf16>, vector<144x128xbf16>, vector<8x128xf32> -> vector<8x128xf32>
    %53 = arith.addf %48, %52 : vector<8x128xf32>
    %54 = vector.extract_strided_slice %44 {offsets = [2, 0], sizes = [8, 144], strides = [1, 1]} : vector<10x144xbf16> to vector<8x144xbf16>
    %c2_26 = arith.constant 2 : index
    %c0_27 = arith.constant 0 : index
    %c0_28 = arith.constant 0 : index
    %55 = vector.load %arg5[%c2_26, %c0_27, %c0_28] : memref<3x144x128xbf16, #tpu.memory_space<vmem>>, vector<1x144x128xbf16>
    %56 = vector.shape_cast %55 : vector<1x144x128xbf16> to vector<144x128xbf16>
    %cst_29 = arith.constant dense<0.000000e+00> : vector<8x128xf32>
    %57 = tpu.matmul %54, %56, %cst_29 {dimension_numbers = #tpu.dot_dimension_numbers<[1], [0], [0], [1], [0, 0, 1, 1], [], []>} : vector<8x144xbf16>, vector<144x128xbf16>, vector<8x128xf32> -> vector<8x128xf32>
    %58 = arith.addf %53, %57 : vector<8x128xf32>
    %59 = vector.extract_strided_slice %1 {offsets = [2, 16], sizes = [8, 128], strides = [1, 1]} : vector<12x160xbf16> to vector<8x128xbf16>
    %60 = arith.extf %59 : vector<8x128xbf16> to vector<8x128xf32>
    %c0_30 = arith.constant 0 : index
    %c0_31 = arith.constant 0 : index
    %61 = vector.load %arg6[%c0_30, %c0_31] : memref<1x128xf32, #tpu.memory_space<vmem>>, vector<1x128xf32>
    %62 = vector.broadcast %61 : vector<1x128xf32> to vector<8x128xf32>
    %63 = arith.addf %58, %62 : vector<8x128xf32>
    %64 = arith.addf %63, %60 : vector<8x128xf32>
    %c1_32 = arith.constant 1 : index
    %65 = memref.load %arg7[%c1_32] : memref<2xf32, #tpu.memory_space<smem>>
    %cst_33 = arith.constant 0.000000e+00 : f32
    %66 = vector.broadcast %cst_33 : f32 to vector<8x128xf32>
    %67 = arith.cmpf ogt, %64, %66 : vector<8x128xf32>
    %68 = vector.broadcast %65 : f32 to vector<8x128xf32>
    %69 = arith.mulf %68, %64 : vector<8x128xf32>
    %70 = arith.select %67, %64, %69 : vector<8x128xi1>, vector<8x128xf32>
    %c0_34 = arith.constant 0 : index
    %c0_35 = arith.constant 0 : index
    %c0_36 = arith.constant 0 : index
    %c0_37 = arith.constant 0 : index
    %71 = vector.load %arg8[%c0_34, %c0_35, %c0_36, %c0_37] : memref<1x1x8x128xf32, #tpu.memory_space<vmem>>, vector<1x1x8x128xf32>
    %72 = vector.shape_cast %71 : vector<1x1x8x128xf32> to vector<8x128xf32>
    %73 = vector.shape_cast %70 : vector<8x128xf32> to vector<1x1x8x128xf32>
    tpu.vector_store %arg8[%c0_34, %c0_35, %c0_36, %c0_37], %73 {strides = array<i32>} : memref<1x1x8x128xf32, #tpu.memory_space<vmem>>, vector<1x1x8x128xf32>,
    return
  }
  func.func @transform_0(%arg0: i32, %arg1: i32) -> (i32, i32, i32, i32) {
    %c0_i32 = arith.constant 0 : i32
    %c0_i32_0 = arith.constant 0 : i32
    %c0_i32_1 = arith.constant 0 : i32
    return %arg0, %arg1, %c0_i32, %c0_i32_0 : i32, i32, i32, i32
  }
  func.func @transform_1(%arg0: i32, %arg1: i32) -> (i32, i32, i32) {
    %c0_i32 = arith.constant 0 : i32
    %c0_i32_0 = arith.constant 0 : i32
    %c0_i32_1 = arith.constant 0 : i32
    %c0_i32_2 = arith.constant 0 : i32
    return %c0_i32, %c0_i32_0, %c0_i32_1 : i32, i32, i32
  }
  func.func @transform_2(%arg0: i32, %arg1: i32) -> (i32, i32) {
    %c0_i32 = arith.constant 0 : i32
    %c0_i32_0 = arith.constant 0 : i32
    %c0_i32_1 = arith.constant 0 : i32
    return %c0_i32, %c0_i32_0 : i32, i32
  }
  func.func @transform_3(%arg0: i32, %arg1: i32) -> (i32, i32, i32) {
    %c0_i32 = arith.constant 0 : i32
    %c0_i32_0 = arith.constant 0 : i32
    %c0_i32_1 = arith.constant 0 : i32
    %c0_i32_2 = arith.constant 0 : i32
    return %c0_i32, %c0_i32_0, %c0_i32_1 : i32, i32, i32
  }
  func.func @transform_4(%arg0: i32, %arg1: i32) -> (i32, i32) {
    %c0_i32 = arith.constant 0 : i32
    %c0_i32_0 = arith.constant 0 : i32
    %c0_i32_1 = arith.constant 0 : i32
    return %c0_i32, %c0_i32_0 : i32, i32
  }
  func.func @transform_5(%arg0: i32, %arg1: i32) -> i32 {
    %c0_i32 = arith.constant 0 : i32
    %c0_i32_0 = arith.constant 0 : i32
    return %c0_i32 : i32
  }
  func.func @transform_6(%arg0: i32, %arg1: i32) -> (i32, i32, i32, i32) {
    %c0_i32 = arith.constant 0 : i32
    %c0_i32_0 = arith.constant 0 : i32
    %c0_i32_1 = arith.constant 0 : i32
    return %arg0, %arg1, %c0_i32, %c0_i32_0 : i32, i32, i32, i32
  }
}

</mosaic_0001>

<llo_original>
// kernel: tpu_custom_call.1
$region0: #{tpu_custom_call.1}
  #allocation0 [shape = 'u32[]', space=smem, size = 0x4, offset = 0x4, fixed_abs, tag = 'smem constant byte address 0x4 - core index']
  #allocation1 [shape = 'u32[144,128]{1,0:T(1,128)}', space=vmem, size = 0x12000, scoped, tag = 'internal scratch']
  %s0 = inlined_call_operand.vmem [shape: bf16[2,2,12,160], index: 0, kind: input, shape index: {}]
  %s1 = inlined_call_operand.vmem [shape: bf16[3,160,144], index: 1, kind: input, shape index: {}]
  %s2 = inlined_call_operand.vmem [shape: f32[1,144], index: 2, kind: input, shape index: {}]
  %s3 = inlined_call_operand.vmem [shape: bf16[3,144,128], index: 3, kind: input, shape index: {}]
  %s4 = inlined_call_operand.vmem [shape: f32[1,128], index: 4, kind: input, shape index: {}]
  %s5 = inlined_call_operand.vmem [shape: f32[2], index: 5, kind: input, shape index: {}]
  %s6 = inlined_call_operand.hbm [shape: f32[2,2,8,128], index: 6, kind: output, shape index: {}]
  %s7 = sld [smem:[#allocation0]]
  $region61: #{tpu_custom_call.1} parent=0
    _
  %s9 = ssub.s32 1, %s7
  %s10 = scalar_select 0, %s9, %s7
  $region1: #{tpu_custom_call.1} parent=0
    #allocation2 [shape = 'u8[512]{0}', space=smem, size = 0x200, scoped, tag = 'input window, operand 5, single buffered']
    #allocation3 [shape = 's32[2]{0}', space=sflag, size = 0x8, scoped, tag = 'scoped memory for tpu_custom_call.1']
    #allocation4 [shape = 's32[2]{0}', space=sflag, size = 0x8, scoped, tag = 'scoped memory for tpu_custom_call.1']
    #allocation5 [shape = 'u8[8192]{0}', space=vmem, size = 0x2000, scoped, tag = 'output window, operand 0']
    %11 = vsyncpa [#allocation4], 0
    %12 = vsyncpa [#allocation3], 0
    %s13 = scalar_lea.sflag [#allocation3], 1
    %14 = vsyncpa %s13, 0
    loop: start=0, step=1, limit=6
    $region2: #{tpu_custom_call.1} parent=1 // loop_pre_header
      _
    $region3: #{tpu_custom_call.1} parent=1 // loop_header
      %s16 = sphi 0, %s20
      %p17 = scmp.ge.s32.totalorder %s16, 6
      %s23 = sphi 0, %s35
      %s24 = sphi 0, %s31
      %s25 = sphi 0, %s23
      %s26 = sphi 0, %s24
      %s27 = sphi 0, %s25
      %s28 = sphi 0, %s26
      %s40 = sphi 0, %s42
      %s43 = sphi 0, %s40
      %s44 = sphi 0, %s43
      %s60 = sphi 0, %s44
      %s64 = sphi 0, %s64
      %s66 = sphi 0, %s64
      %s67 = sphi 0, %s66
      %s81 = sphi 0, %s67
      %s85 = sphi 0, %s85
      %s87 = sphi 0, %s85
      %s88 = sphi 0, %s87
      %s102 = sphi 0, %s88
      %s106 = sphi 0, %s106
      %s108 = sphi 0, %s106
      %s109 = sphi 0, %s108
      %s123 = sphi 0, %s109
      %s127 = sphi 0, %s127
      %s129 = sphi 0, %s127
      %s130 = sphi 0, %s129
      %s144 = sphi 0, %s130
      %s148 = sphi 0, %s148
      %s150 = sphi 0, %s148
      %s151 = sphi 0, %s150
      %s165 = sphi 0, %s151
      %s173 = sphi 0, %s175
      %s176 = sphi 0, %s173
      %s177 = sphi 0, %s176
      %s193 = sphi 0, %s177
    $region4: #{tpu_custom_call.1} parent=1 // loop_header_branch
      %19 = sbr.rel (%p17) target = $region8
    $region5: #{tpu_custom_call.1} parent=1 // loop_body
      %s21 = ssub.s32 %s16, 1
      %s22 = ssub.s32 %s16, 2
      %s29 = sadd.s32 1, %s24
      %p30 = scmp.ge.s32.totalorder %s29, 2
      %s31 = scalar_select %p30, 0, %s29
      %s32 = sadd.s32 1, %s23
      %s33 = scalar_select %p30, %s32, %s23
      %p34 = scmp.ge.s32.totalorder %s33, 2
      %s35 = scalar_select %p34, 0, %s33
      %s36 = ssub.s32 %s23, %s35
      %s37 = ssub.s32 %s24, %s31
      %s38 = sor.u32 %s36, %s37
      %p39 = scmp.eq.s32.totalorder %s38, 0
      %s41 = sadd.s32 %s40, 1
      %s42 = scalar_select %p39, %s40, %s41
      %p45 = pneg %p39
      %p46 = scmp.eq.s32.totalorder %s16, 3
      %p47 = por %p45, %p46
      %p48 = scmp.ne.s32.totalorder %s40, %s43
      %p49 = scmp.eq.s32.totalorder %s16, 0
      %p50 = por %p48, %p49
      %p51 = scmp.ne.s32.totalorder %s40, %s43
      %p52 = scmp.eq.s32.totalorder %s21, 3
      %p53 = por %p51, %p52
      %p54 = scmp.ne.s32.totalorder %s43, %s44
      %p55 = scmp.eq.s32.totalorder %s21, 0
      %p56 = por %p54, %p55
      %p57 = scmp.ne.s32.totalorder %s43, %s44
      %p58 = scmp.eq.s32.totalorder %s22, 3
      %p59 = por %p57, %p58
      %p61 = scmp.ne.s32.totalorder %s44, %s60
      %p62 = scmp.eq.s32.totalorder %s22, 0
      %p63 = por %p61, %p62
      %s65 = sadd.s32 %s64, 1
      %p68 = scmp.eq.s32.totalorder %s16, 3
      %p69 = scmp.ne.s32.totalorder %s64, %s66
      %p70 = scmp.eq.s32.totalorder %s16, 0
      %p71 = por %p69, %p70
      %p72 = scmp.ne.s32.totalorder %s64, %s66
      %p73 = scmp.eq.s32.totalorder %s21, 3
      %p74 = por %p72, %p73
      %p75 = scmp.ne.s32.totalorder %s66, %s67
      %p76 = scmp.eq.s32.totalorder %s21, 0
      %p77 = por %p75, %p76
      %p78 = scmp.ne.s32.totalorder %s66, %s67
      %p79 = scmp.eq.s32.totalorder %s22, 3
      %p80 = por %p78, %p79
      %p82 = scmp.ne.s32.totalorder %s67, %s81
      %p83 = scmp.eq.s32.totalorder %s22, 0
      %p84 = por %p82, %p83
      %s86 = sadd.s32 %s85, 1
      %p89 = scmp.eq.s32.totalorder %s16, 3
      %p90 = scmp.ne.s32.totalorder %s85, %s87
      %p91 = scmp.eq.s32.totalorder %s16, 0
      %p92 = por %p90, %p91
      %p93 = scmp.ne.s32.totalorder %s85, %s87
      %p94 = scmp.eq.s32.totalorder %s21, 3
      %p95 = por %p93, %p94
      %p96 = scmp.ne.s32.totalorder %s87, %s88
      %p97 = scmp.eq.s32.totalorder %s21, 0
      %p98 = por %p96, %p97
      %p99 = scmp.ne.s32.totalorder %s87, %s88
      %p100 = scmp.eq.s32.totalorder %s22, 3
      %p101 = por %p99, %p100
      %p103 = scmp.ne.s32.totalorder %s88, %s102
      %p104 = scmp.eq.s32.totalorder %s22, 0
      %p105 = por %p103, %p104
      %s107 = sadd.s32 %s106, 1
      %p110 = scmp.eq.s32.totalorder %s16, 3
      %p111 = scmp.ne.s32.totalorder %s106, %s108
      %p112 = scmp.eq.s32.totalorder %s16, 0
      %p113 = por %p111, %p112
      %p114 = scmp.ne.s32.totalorder %s106, %s108
      %p115 = scmp.eq.s32.totalorder %s21, 3
      %p116 = por %p114, %p115
      %p117 = scmp.ne.s32.totalorder %s108, %s109
      %p118 = scmp.eq.s32.totalorder %s21, 0
      %p119 = por %p117, %p118
      %p120 = scmp.ne.s32.totalorder %s108, %s109
      %p121 = scmp.eq.s32.totalorder %s22, 3
      %p122 = por %p120, %p121
      %p124 = scmp.ne.s32.totalorder %s109, %s123
      %p125 = scmp.eq.s32.totalorder %s22, 0
      %p126 = por %p124, %p125
      %s128 = sadd.s32 %s127, 1
      %p131 = scmp.eq.s32.totalorder %s16, 3
      %p132 = scmp.ne.s32.totalorder %s127, %s129
      %p133 = scmp.eq.s32.totalorder %s16, 0
      %p134 = por %p132, %p133
      %p135 = scmp.ne.s32.totalorder %s127, %s129
      %p136 = scmp.eq.s32.totalorder %s21, 3
      %p137 = por %p135, %p136
      %p138 = scmp.ne.s32.totalorder %s129, %s130
      %p139 = scmp.eq.s32.totalorder %s21, 0
      %p140 = por %p138, %p139
      %p141 = scmp.ne.s32.totalorder %s129, %s130
      %p142 = scmp.eq.s32.totalorder %s22, 3
      %p143 = por %p141, %p142
      %p145 = scmp.ne.s32.totalorder %s130, %s144
      %p146 = scmp.eq.s32.totalorder %s22, 0
      %p147 = por %p145, %p146
      %s149 = sadd.s32 %s148, 1
      %p152 = scmp.eq.s32.totalorder %s16, 3
      %p153 = scmp.ne.s32.totalorder %s148, %s150
      %p154 = scmp.eq.s32.totalorder %s16, 0
      %p155 = por %p153, %p154
      %p156 = scmp.ne.s32.totalorder %s148, %s150
      %p157 = scmp.eq.s32.totalorder %s21, 3
      %p158 = por %p156, %p157
      %p159 = scmp.ne.s32.totalorder %s150, %s151
      %p160 = scmp.eq.s32.totalorder %s21, 0
      %p161 = por %p159, %p160
      %p162 = scmp.ne.s32.totalorder %s150, %s151
      %p163 = scmp.eq.s32.totalorder %s22, 3
      %p164 = por %p162, %p163
      %p166 = scmp.ne.s32.totalorder %s151, %s165
      %p167 = scmp.eq.s32.totalorder %s22, 0
      %p168 = por %p166, %p167
      %s169 = ssub.s32 %s23, %s35
      %s170 = ssub.s32 %s24, %s31
      %s171 = sor.u32 %s169, %s170
      %p172 = scmp.eq.s32.totalorder %s171, 0
      %s174 = sadd.s32 %s173, 1
      %s175 = scalar_select %p172, %s173, %s174
      %p178 = pneg %p172
      %p179 = scmp.eq.s32.totalorder %s16, 3
      %p180 = por %p178, %p179
      %p181 = scmp.ne.s32.totalorder %s173, %s176
      %p182 = scmp.eq.s32.totalorder %s16, 0
      %p183 = por %p181, %p182
      %p184 = scmp.ne.s32.totalorder %s173, %s176
      %p185 = scmp.eq.s32.totalorder %s21, 3
      %p186 = por %p184, %p185
      %p187 = scmp.ne.s32.totalorder %s176, %s177
      %p188 = scmp.eq.s32.totalorder %s21, 0
      %p189 = por %p187, %p188
      %p190 = scmp.ne.s32.totalorder %s176, %s177
      %p191 = scmp.eq.s32.totalorder %s22, 3
      %p192 = por %p190, %p191
      %p194 = scmp.ne.s32.totalorder %s177, %s193
      %p195 = scmp.eq.s32.totalorder %s22, 0
      %p196 = por %p194, %p195
      %p197 = scmp.le.s32.totalorder 1, %s16
      %p198 = scmp.lt.s32.totalorder %s16, 5
      %p199 = pnand %p197, %p198
      %p200 = pneg %p199
      // Predicated region
      $region9: #{tpu_custom_call.1} parent=5 // pred_check
        _
      $region10: #{tpu_custom_call.1} parent=5 // pred_check_branch
        %202 = sbr.rel (%p199) target = $region12
      $region11: #{tpu_custom_call.1} parent=5 // pred_region
        %s203 = ssub.s32 %s16, 1
        // Predicated region
        $region13: #{tpu_custom_call.1} parent=11 // pred_check
          %p204 = pneg %p77
        $region14: #{tpu_custom_call.1} parent=11 // pred_check_branch
          %206 = sbr.rel (%p204) target = $region16
        $region15: #{tpu_custom_call.1} parent=11 // pred_region
          _
        $region16: #{tpu_custom_call.1} parent=11 // pred_fallthru
          _
        // Predicated region
        $region17: #{tpu_custom_call.1} parent=11 // pred_check
          %p207 = pneg %p98
        $region18: #{tpu_custom_call.1} parent=11 // pred_check_branch
          %209 = sbr.rel (%p207) target = $region20
        $region19: #{tpu_custom_call.1} parent=11 // pred_region
          _
        $region20: #{tpu_custom_call.1} parent=11 // pred_fallthru
          _
        // Predicated region
        $region21: #{tpu_custom_call.1} parent=11 // pred_check
          %p210 = pneg %p119
        $region22: #{tpu_custom_call.1} parent=11 // pred_check_branch
          %212 = sbr.rel (%p210) target = $region24
        $region23: #{tpu_custom_call.1} parent=11 // pred_region
          _
        $region24: #{tpu_custom_call.1} parent=11 // pred_fallthru
          _
        // Predicated region
        $region25: #{tpu_custom_call.1} parent=11 // pred_check
          %p213 = pneg %p140
        $region26: #{tpu_custom_call.1} parent=11 // pred_check_branch
          %215 = sbr.rel (%p213) target = $region28
        $region27: #{tpu_custom_call.1} parent=11 // pred_region
          _
        $region28: #{tpu_custom_call.1} parent=11 // pred_fallthru
          _
        // Predicated region
        $region29: #{tpu_custom_call.1} parent=11 // pred_check
          %p216 = pneg %p161
        $region30: #{tpu_custom_call.1} parent=11 // pred_check_branch
          %218 = sbr.rel (%p216) target = $region32
        $region31: #{tpu_custom_call.1} parent=11 // pred_region
          %s220 = ssub.s32 16, 16
          %221 = vsyncadd [#allocation4], %s220
          %s223 = sshll.u32 %s5, 4
          %s224 = int_to_ptr.vmem [resolvable:$true] %s223
          %226 = dma.vmem_to_smem %s224, 16, [#allocation2], [#allocation4]
        $region32: #{tpu_custom_call.1} parent=11 // pred_fallthru
          _
      $region12: #{tpu_custom_call.1} parent=5 // pred_fallthru
        _
      %p227 = scmp.lt.s32.totalorder %s16, 4
      // Predicated region
      $region33: #{tpu_custom_call.1} parent=5 // pred_check
        %p228 = pneg %p227
      $region34: #{tpu_custom_call.1} parent=5 // pred_check_branch
        %230 = sbr.rel (%p228) target = $region36
      $region35: #{tpu_custom_call.1} parent=5 // pred_region
        // Predicated region
        $region37: #{tpu_custom_call.1} parent=35 // pred_check
          %p231 = pneg %p50
        $region38: #{tpu_custom_call.1} parent=35 // pred_check_branch
          %233 = sbr.rel (%p231) target = $region40
        $region39: #{tpu_custom_call.1} parent=35 // pred_region
          %p234 = scmp.lt.s32.totalorder %s23, 1
          %s235 = scalar_select %p234, %s23, 1
          %p236 = scmp.lt.s32.totalorder %s24, 1
          %s237 = scalar_select %p236, %s24, 1
          %s238 = smul.addr %s237, 4
          %s239 = smul.addr %s235, 8
          %s240 = sadd.s32 %s238, %s239
          %s241 = smul.addr %s240, 4
          %s242 = scalar_lea.vmem %s0, %s241
        $region40: #{tpu_custom_call.1} parent=35 // pred_fallthru
          _
      $region36: #{tpu_custom_call.1} parent=5 // pred_fallthru
        _
      %p243 = scmp.le.s32.totalorder 1, %s16
      %p244 = scmp.lt.s32.totalorder %s16, 5
      %p245 = pnand %p243, %p244
      %p246 = pneg %p245
      // Predicated region
      $region41: #{tpu_custom_call.1} parent=5 // pred_check
        _
      $region42: #{tpu_custom_call.1} parent=5 // pred_check_branch
        %248 = sbr.rel (%p245) target = $region44
      $region43: #{tpu_custom_call.1} parent=5 // pred_region
        %s249 = ssub.s32 %s16, 1
        // Predicated region
        $region45: #{tpu_custom_call.1} parent=43 // pred_check
          %p250 = pneg %p161
        $region46: #{tpu_custom_call.1} parent=43 // pred_check_branch
          %252 = sbr.rel (%p250) target = $region48
        $region47: #{tpu_custom_call.1} parent=43 // pred_region
          %253 = dma.done [#allocation4], 16
        $region48: #{tpu_custom_call.1} parent=43 // pred_fallthru
          _
        %254 = sfence
        %p255 = scmp.lt.s32.totalorder %s25, 1
        %s256 = scalar_select %p255, %s25, 1
        %p257 = scmp.lt.s32.totalorder %s26, 1
        %s258 = scalar_select %p257, %s26, 1
        %s259 = smul.addr %s258, 4
        %s260 = smul.addr %s256, 8
        %s261 = sadd.s32 %s259, %s260
        %s262 = smul.addr %s261, 4
        %s263 = scalar_lea.vmem %s0, %s262
        %p264 = pneg %p56
        %p265 = pneg %p53
        %p266 = pneg %p77
        %p267 = pneg %p74
        %p268 = pneg %p98
        %p269 = pneg %p95
        %p270 = pneg %p119
        %p271 = pneg %p116
        %p272 = pneg %p140
        %p273 = pneg %p137
        %p274 = pneg %p161
        %p275 = pneg %p158
        %p276 = pneg %p189
        %p277 = pneg %p186
        %s278 = sand.u32 %s176, 1
        %s279 = scalar_lea.sflag [#allocation3], %s278
        %s280 = sand.u32 %s176, 1
        %s281 = smul.addr %s280, 8
        %s282 = scalar_lea.vmem [#allocation5], %s281
        %p283 = scmp.lt.s32.totalorder %s25, 1
        %s284 = scalar_select %p283, %s25, 1
        %p285 = scmp.lt.s32.totalorder %s26, 1
        %s286 = scalar_select %p285, %s26, 1
        %s287 = smul.addr %s286, 4
        %s288 = smul.addr %s284, 8
        %s289 = sadd.s32 %s287, %s288
        %s290 = smul.addr %s289, 4
        %s291 = scalar_lea.vmem %s0, %s290
        %v293 = vld [vmem:[%s291] sm:$0xff]
        %v294 = vld [vmem:[%s291 + $0x8] sm:$0x33]
        %v295 = vld [vmem:[%s1] sm:$0xff]
        %v296 = vld [vmem:[%s1 + $0x8] sm:$0xff]
        %v297 = vld [vmem:[%s1 + $0x10] sm:$0xff]
        %v298 = vld [vmem:[%s1 + $0x18] sm:$0xff]
        %v299 = vld [vmem:[%s1 + $0x20] sm:$0xff]
        %v300 = vld [vmem:[%s1 + $0x28] sm:$0xff]
        %v301 = vld [vmem:[%s1 + $0x30] sm:$0xff]
        %v302 = vld [vmem:[%s1 + $0x38] sm:$0xff]
        %v303 = vld [vmem:[%s1 + $0x40] sm:$0xff]
        %v304 = vld [vmem:[%s1 + $0x48] sm:$0xff]
        %v305 = vld [vmem:[%s1 + $0x50] sm:$0xff]
        %v306 = vld [vmem:[%s1 + $0x58] sm:$0xff]
        %v307 = vld [vmem:[%s1 + $0x60] sm:$0xff]
        %v308 = vld [vmem:[%s1 + $0x68] sm:$0xff]
        %v309 = vld [vmem:[%s1 + $0x70] sm:$0xff]
        %v310 = vld [vmem:[%s1 + $0x78] sm:$0xff]
        %v311 = vld [vmem:[%s1 + $0x80] sm:$0xff]
        %v312 = vld [vmem:[%s1 + $0x88] sm:$0xff]
        %v313 = vld [vmem:[%s1 + $0x90] sm:$0xff]
        %v314 = vld [vmem:[%s1 + $0x98] sm:$0xff]
        %s315 = scalar_lea.vmem %s1, 160
        %v316 = vld [vmem:[%s315] sm:$0xff]
        %v317 = vld [vmem:[%s315 + $0x8] sm:$0xff]
        %v318 = vld [vmem:[%s315 + $0x10] sm:$0xff]
        %v319 = vld [vmem:[%s315 + $0x18] sm:$0xff]
        %v320 = vld [vmem:[%s315 + $0x20] sm:$0xff]
        %v321 = vld [vmem:[%s315 + $0x28] sm:$0xff]
        %v322 = vld [vmem:[%s315 + $0x30] sm:$0xff]
        %v323 = vld [vmem:[%s315 + $0x38] sm:$0xff]
        %v324 = vld [vmem:[%s315 + $0x40] sm:$0xff]
        %v325 = vld [vmem:[%s315 + $0x48] sm:$0xff]
        %v326 = vld [vmem:[%s315 + $0x50] sm:$0xff]
        %v327 = vld [vmem:[%s315 + $0x58] sm:$0xff]
        %v328 = vld [vmem:[%s315 + $0x60] sm:$0xff]
        %v329 = vld [vmem:[%s315 + $0x68] sm:$0xff]
        %v330 = vld [vmem:[%s315 + $0x70] sm:$0xff]
        %v331 = vld [vmem:[%s315 + $0x78] sm:$0xff]
        %v332 = vld [vmem:[%s315 + $0x80] sm:$0xff]
        %v333 = vld [vmem:[%s315 + $0x88] sm:$0xff]
        %v334 = vld [vmem:[%s315 + $0x90] sm:$0xff]
        %v335 = vld [vmem:[%s315 + $0x98] sm:$0xff]
        %v338 = vunpack.c.l.b16 %v293
        %v339 = vunpack.c.h.b16 %v293
        %v340 = vunpack.c.l.b16 %v294
        %v341 = vunpack.c.h.b16 %v294
        %v342 = vpack.c.b16 %v340, %v338
        %v343 = vpack.c.b16 %v341, %v339
        %v345 = vshrl.u32 %v342, 16
        %v347 = vshll.u32 %v342, 16
        %v349 = vrot.slane %v347, 1
        %v350 = vor.u32 %v345, %v349
        %v352 = vshrl.u32 %v343, 16
        %v354 = vshll.u32 %v343, 16
        %v356 = vrot.slane %v354, 1
        %v357 = vor.u32 %v352, %v356
        %v379 = vunpack.c.l.b16 %v316
        %v380 = vunpack.c.h.b16 %v316
        %v381 = vunpack.c.l.b16 %v317
        %v382 = vunpack.c.h.b16 %v317
        %v383 = vunpack.c.l.b16 %v318
        %v384 = vunpack.c.h.b16 %v318
        %v385 = vunpack.c.l.b16 %v319
        %v386 = vunpack.c.h.b16 %v319
        %v387 = vunpack.c.l.b16 %v320
        %v388 = vunpack.c.h.b16 %v320
        %v389 = vunpack.c.l.b16 %v321
        %v390 = vunpack.c.h.b16 %v321
        %v391 = vunpack.c.l.b16 %v322
        %v392 = vunpack.c.h.b16 %v322
        %v393 = vunpack.c.l.b16 %v323
        %v394 = vunpack.c.h.b16 %v323
        %v395 = vunpack.c.l.b16 %v324
        %v396 = vunpack.c.h.b16 %v324
        %v397 = vunpack.c.l.b16 %v325
        %v398 = vunpack.c.h.b16 %v325
        %v399 = vunpack.c.l.b16 %v326
        %v400 = vunpack.c.h.b16 %v326
        %v401 = vunpack.c.l.b16 %v327
        %v402 = vunpack.c.h.b16 %v327
        %v403 = vunpack.c.l.b16 %v328
        %v404 = vunpack.c.h.b16 %v328
        %v405 = vunpack.c.l.b16 %v329
        %v406 = vunpack.c.h.b16 %v329
        %v407 = vunpack.c.l.b16 %v330
        %v408 = vunpack.c.h.b16 %v330
        %v409 = vunpack.c.l.b16 %v331
        %v410 = vunpack.c.h.b16 %v331
        %v411 = vunpack.c.l.b16 %v332
        %v412 = vunpack.c.h.b16 %v332
        %v413 = vunpack.c.l.b16 %v333
        %v414 = vunpack.c.h.b16 %v333
        %v415 = vunpack.c.l.b16 %v334
        %v416 = vunpack.c.h.b16 %v334
        %v417 = vunpack.c.l.b16 %v335
        %v418 = vunpack.c.h.b16 %v335
        %v419 = vpack.c.b16 %v381, %v379
        %v420 = vpack.c.b16 %v382, %v380
        %v421 = vpack.c.b16 %v385, %v383
        %v422 = vpack.c.b16 %v386, %v384
        %v423 = vpack.c.b16 %v389, %v387
        %v424 = vpack.c.b16 %v390, %v388
        %v425 = vpack.c.b16 %v393, %v391
        %v426 = vpack.c.b16 %v394, %v392
        %v427 = vpack.c.b16 %v397, %v395
        %v428 = vpack.c.b16 %v398, %v396
        %v429 = vpack.c.b16 %v401, %v399
        %v430 = vpack.c.b16 %v402, %v400
        %v431 = vpack.c.b16 %v405, %v403
        %v432 = vpack.c.b16 %v406, %v404
        %v433 = vpack.c.b16 %v409, %v407
        %v434 = vpack.c.b16 %v410, %v408
        %v435 = vpack.c.b16 %v413, %v411
        %v436 = vpack.c.b16 %v414, %v412
        %v437 = vpack.c.b16 %v417, %v415
        %v438 = vpack.c.b16 %v418, %v416
        %vm459 = vcmask 261120
        %v461 = vsel %vm459, %v357, 0
        %463 = vmatprep.subr.bf16.mxu0 %v420
        %464 = vmatpush1.bf16.msra.mxu0 %v419
        %465 = vmatprep.subr.bf16.mxu0 %v422
        %466 = vmatpush1.bf16.msra.mxu0 %v421
        %467 = vmatprep.subr.bf16.mxu0 %v424
        %468 = vmatpush1.bf16.msra.mxu0 %v423
        %469 = vmatprep.subr.bf16.mxu0 %v426
        %470 = vmatpush1.bf16.msra.mxu0 %v425
        %471 = vmatprep.subr.bf16.mxu0 %v428
        %472 = vmatpush1.bf16.msra.mxu0 %v427
        %473 = vmatprep.subr.bf16.mxu0 %v430
        %474 = vmatpush1.bf16.msra.mxu0 %v429
        %475 = vmatprep.subr.bf16.mxu0 %v432
        %476 = vmatpush1.bf16.msra.mxu0 %v431
        %477 = vmatprep.subr.bf16.mxu0 %v434
        %478 = vmatpush1.bf16.msra.mxu0 %v433
        %479 = vmatprep.subr.bf16.mxu0 %v436
        %480 = vmatpush1.bf16.msra.mxu0 %v435
        %481 = vmatprep.subr.bf16.mxu0 %v438
        %482 = vmatpush1.bf16.msra.mxu0 %v437
        %483 = vmatprep.subr.bf16.mxu0 0
        %484 = vmatpush1.bf16.msra.mxu0 0
        %485 = vmatprep.subr.bf16.mxu0 0
        %486 = vmatpush1.bf16.msra.mxu0 0
        %487 = vmatprep.subr.bf16.mxu0 0
        %488 = vmatpush1.bf16.msra.mxu0 0
        %489 = vmatprep.subr.bf16.mxu0 0
        %490 = vmatpush1.bf16.msra.mxu0 0
        %491 = vmatprep.subr.bf16.mxu0 0
        %492 = vmatpush1.bf16.msra.mxu0 0
        %493 = vmatprep.subr.bf16.mxu0 0
        %494 = vmatpush1.bf16.msra.mxu0 0
        %495 = vmatprep.mubr.bf16.mxu0 %v461
        %496 = vmatmul.mubr.bf16.gmra.mrb[0].mxu0 %v350
        %v497 = vpop.f32.mrb[0].mxu0
        %v498 = vadd.f32 0.0, %v497
        %v499 = vpop.f32.mrb[0].mxu0
        %v500 = vadd.f32 0.0, %v499
        %v501 = vpop.f32.mrb[0].mxu0
        %v502 = vadd.f32 0.0, %v501
        %v503 = vpop.f32.mrb[0].mxu0
        %v504 = vadd.f32 0.0, %v503
        %505 = vdwg.mxu0
        %v527 = vunpack.c.l.b16 %v295
        %v528 = vunpack.c.h.b16 %v295
        %v529 = vunpack.c.l.b16 %v296
        %v530 = vunpack.c.h.b16 %v296
        %v531 = vunpack.c.l.b16 %v297
        %v532 = vunpack.c.h.b16 %v297
        %v533 = vunpack.c.l.b16 %v298
        %v534 = vunpack.c.h.b16 %v298
        %v535 = vunpack.c.l.b16 %v299
        %v536 = vunpack.c.h.b16 %v299
        %v537 = vunpack.c.l.b16 %v300
        %v538 = vunpack.c.h.b16 %v300
        %v539 = vunpack.c.l.b16 %v301
        %v540 = vunpack.c.h.b16 %v301
        %v541 = vunpack.c.l.b16 %v302
        %v542 = vunpack.c.h.b16 %v302
        %v543 = vunpack.c.l.b16 %v303
        %v544 = vunpack.c.h.b16 %v303
        %v545 = vunpack.c.l.b16 %v304
        %v546 = vunpack.c.h.b16 %v304
        %v547 = vunpack.c.l.b16 %v305
        %v548 = vunpack.c.h.b16 %v305
        %v549 = vunpack.c.l.b16 %v306
        %v550 = vunpack.c.h.b16 %v306
        %v551 = vunpack.c.l.b16 %v307
        %v552 = vunpack.c.h.b16 %v307
        %v553 = vunpack.c.l.b16 %v308
        %v554 = vunpack.c.h.b16 %v308
        %v555 = vunpack.c.l.b16 %v309
        %v556 = vunpack.c.h.b16 %v309
        %v557 = vunpack.c.l.b16 %v310
        %v558 = vunpack.c.h.b16 %v310
        %v559 = vunpack.c.l.b16 %v311
        %v560 = vunpack.c.h.b16 %v311
        %v561 = vunpack.c.l.b16 %v312
        %v562 = vunpack.c.h.b16 %v312
        %v563 = vunpack.c.l.b16 %v313
        %v564 = vunpack.c.h.b16 %v313
        %v565 = vunpack.c.l.b16 %v314
        %v566 = vunpack.c.h.b16 %v314
        %v567 = vpack.c.b16 %v529, %v527
        %v568 = vpack.c.b16 %v530, %v528
        %v569 = vpack.c.b16 %v533, %v531
        %v570 = vpack.c.b16 %v534, %v532
        %v571 = vpack.c.b16 %v537, %v535
        %v572 = vpack.c.b16 %v538, %v536
        %v573 = vpack.c.b16 %v541, %v539
        %v574 = vpack.c.b16 %v542, %v540
        %v575 = vpack.c.b16 %v545, %v543
        %v576 = vpack.c.b16 %v546, %v544
        %v577 = vpack.c.b16 %v549, %v547
        %v578 = vpack.c.b16 %v550, %v548
        %v579 = vpack.c.b16 %v553, %v551
        %v580 = vpack.c.b16 %v554, %v552
        %v581 = vpack.c.b16 %v557, %v555
        %v582 = vpack.c.b16 %v558, %v556
        %v583 = vpack.c.b16 %v561, %v559
        %v584 = vpack.c.b16 %v562, %v560
        %v585 = vpack.c.b16 %v565, %v563
        %v586 = vpack.c.b16 %v566, %v564
        %v607 = vsel %vm459, %v343, 0
        %609 = vmatprep.subr.bf16.mxu0 %v568
        %610 = vmatpush1.bf16.msra.mxu0 %v567
        %611 = vmatprep.subr.bf16.mxu0 %v570
        %612 = vmatpush1.bf16.msra.mxu0 %v569
        %613 = vmatprep.subr.bf16.mxu0 %v572
        %614 = vmatpush1.bf16.msra.mxu0 %v571
        %615 = vmatprep.subr.bf16.mxu0 %v574
        %616 = vmatpush1.bf16.msra.mxu0 %v573
        %617 = vmatprep.subr.bf16.mxu0 %v576
        %618 = vmatpush1.bf16.msra.mxu0 %v575
        %619 = vmatprep.subr.bf16.mxu0 %v578
        %620 = vmatpush1.bf16.msra.mxu0 %v577
        %621 = vmatprep.subr.bf16.mxu0 %v580
        %622 = vmatpush1.bf16.msra.mxu0 %v579
        %623 = vmatprep.subr.bf16.mxu0 %v582
        %624 = vmatpush1.bf16.msra.mxu0 %v581
        %625 = vmatprep.subr.bf16.mxu0 %v584
        %626 = vmatpush1.bf16.msra.mxu0 %v583
        %627 = vmatprep.subr.bf16.mxu0 %v586
        %628 = vmatpush1.bf16.msra.mxu0 %v585
        %629 = vmatprep.subr.bf16.mxu0 0
        %630 = vmatpush1.bf16.msra.mxu0 0
        %631 = vmatprep.subr.bf16.mxu0 0
        %632 = vmatpush1.bf16.msra.mxu0 0
        %633 = vmatprep.subr.bf16.mxu0 0
        %634 = vmatpush1.bf16.msra.mxu0 0
        %635 = vmatprep.subr.bf16.mxu0 0
        %636 = vmatpush1.bf16.msra.mxu0 0
        %637 = vmatprep.subr.bf16.mxu0 0
        %638 = vmatpush1.bf16.msra.mxu0 0
        %639 = vmatprep.subr.bf16.mxu0 0
        %640 = vmatpush1.bf16.msra.mxu0 0
        %641 = vmatprep.mubr.bf16.mxu0 %v607
        %642 = vmatmul.mubr.bf16.gmra.mrb[0].mxu0 %v342
        %v643 = vpop.f32.mrb[0].mxu0
        %v644 = vadd.f32 %v498, %v643
        %v645 = vpop.f32.mrb[0].mxu0
        %v646 = vadd.f32 %v500, %v645
        %v647 = vpop.f32.mrb[0].mxu0
        %v648 = vadd.f32 %v502, %v647
        %v649 = vpop.f32.mrb[0].mxu0
        %v650 = vadd.f32 %v504, %v649
        %651 = vdwg.mxu0
        %s652 = scalar_lea.vmem %s1, 320
        %v653 = vld [vmem:[%s652] sm:$0xff]
        %v654 = vld [vmem:[%s652 + $0x8] sm:$0xff]
        %v655 = vld [vmem:[%s652 + $0x10] sm:$0xff]
        %v656 = vld [vmem:[%s652 + $0x18] sm:$0xff]
        %v657 = vld [vmem:[%s652 + $0x20] sm:$0xff]
        %v658 = vld [vmem:[%s652 + $0x28] sm:$0xff]
        %v659 = vld [vmem:[%s652 + $0x30] sm:$0xff]
        %v660 = vld [vmem:[%s652 + $0x38] sm:$0xff]
        %v661 = vld [vmem:[%s652 + $0x40] sm:$0xff]
        %v662 = vld [vmem:[%s652 + $0x48] sm:$0xff]
        %v663 = vld [vmem:[%s652 + $0x50] sm:$0xff]
        %v664 = vld [vmem:[%s652 + $0x58] sm:$0xff]
        %v665 = vld [vmem:[%s652 + $0x60] sm:$0xff]
        %v666 = vld [vmem:[%s652 + $0x68] sm:$0xff]
        %v667 = vld [vmem:[%s652 + $0x70] sm:$0xff]
        %v668 = vld [vmem:[%s652 + $0x78] sm:$0xff]
        %v669 = vld [vmem:[%s652 + $0x80] sm:$0xff]
        %v670 = vld [vmem:[%s652 + $0x88] sm:$0xff]
        %v671 = vld [vmem:[%s652 + $0x90] sm:$0xff]
        %v672 = vld [vmem:[%s652 + $0x98] sm:$0xff]
        %v673 = vrot.slane %v342, 1
        %v674 = vrot.slane %v343, 1
        %v696 = vunpack.c.l.b16 %v653
        %v697 = vunpack.c.h.b16 %v653
        %v698 = vunpack.c.l.b16 %v654
        %v699 = vunpack.c.h.b16 %v654
        %v700 = vunpack.c.l.b16 %v655
        %v701 = vunpack.c.h.b16 %v655
        %v702 = vunpack.c.l.b16 %v656
        %v703 = vunpack.c.h.b16 %v656
        %v704 = vunpack.c.l.b16 %v657
        %v705 = vunpack.c.h.b16 %v657
        %v706 = vunpack.c.l.b16 %v658
        %v707 = vunpack.c.h.b16 %v658
        %v708 = vunpack.c.l.b16 %v659
        %v709 = vunpack.c.h.b16 %v659
        %v710 = vunpack.c.l.b16 %v660
        %v711 = vunpack.c.h.b16 %v660
        %v712 = vunpack.c.l.b16 %v661
        %v713 = vunpack.c.h.b16 %v661
        %v714 = vunpack.c.l.b16 %v662
        %v715 = vunpack.c.h.b16 %v662
        %v716 = vunpack.c.l.b16 %v663
        %v717 = vunpack.c.h.b16 %v663
        %v718 = vunpack.c.l.b16 %v664
        %v719 = vunpack.c.h.b16 %v664
        %v720 = vunpack.c.l.b16 %v665
        %v721 = vunpack.c.h.b16 %v665
        %v722 = vunpack.c.l.b16 %v666
        %v723 = vunpack.c.h.b16 %v666
        %v724 = vunpack.c.l.b16 %v667
        %v725 = vunpack.c.h.b16 %v667
        %v726 = vunpack.c.l.b16 %v668
        %v727 = vunpack.c.h.b16 %v668
        %v728 = vunpack.c.l.b16 %v669
        %v729 = vunpack.c.h.b16 %v669
        %v730 = vunpack.c.l.b16 %v670
        %v731 = vunpack.c.h.b16 %v670
        %v732 = vunpack.c.l.b16 %v671
        %v733 = vunpack.c.h.b16 %v671
        %v734 = vunpack.c.l.b16 %v672
        %v735 = vunpack.c.h.b16 %v672
        %v736 = vpack.c.b16 %v698, %v696
        %v737 = vpack.c.b16 %v699, %v697
        %v738 = vpack.c.b16 %v702, %v700
        %v739 = vpack.c.b16 %v703, %v701
        %v740 = vpack.c.b16 %v706, %v704
        %v741 = vpack.c.b16 %v707, %v705
        %v742 = vpack.c.b16 %v710, %v708
        %v743 = vpack.c.b16 %v711, %v709
        %v744 = vpack.c.b16 %v714, %v712
        %v745 = vpack.c.b16 %v715, %v713
        %v746 = vpack.c.b16 %v718, %v716
        %v747 = vpack.c.b16 %v719, %v717
        %v748 = vpack.c.b16 %v722, %v720
        %v749 = vpack.c.b16 %v723, %v721
        %v750 = vpack.c.b16 %v726, %v724
        %v751 = vpack.c.b16 %v727, %v725
        %v752 = vpack.c.b16 %v730, %v728
        %v753 = vpack.c.b16 %v731, %v729
        %v754 = vpack.c.b16 %v734, %v732
        %v755 = vpack.c.b16 %v735, %v733
        %v777 = vsel %vm459, %v674, 0
        %779 = vmatprep.subr.bf16.mxu0 %v737
        %780 = vmatpush1.bf16.msra.mxu0 %v736
        %781 = vmatprep.subr.bf16.mxu0 %v739
        %782 = vmatpush1.bf16.msra.mxu0 %v738
        %783 = vmatprep.subr.bf16.mxu0 %v741
        %784 = vmatpush1.bf16.msra.mxu0 %v740
        %785 = vmatprep.subr.bf16.mxu0 %v743
        %786 = vmatpush1.bf16.msra.mxu0 %v742
        %787 = vmatprep.subr.bf16.mxu0 %v745
        %788 = vmatpush1.bf16.msra.mxu0 %v744
        %789 = vmatprep.subr.bf16.mxu0 %v747
        %790 = vmatpush1.bf16.msra.mxu0 %v746
        %791 = vmatprep.subr.bf16.mxu0 %v749
        %792 = vmatpush1.bf16.msra.mxu0 %v748
        %793 = vmatprep.subr.bf16.mxu0 %v751
        %794 = vmatpush1.bf16.msra.mxu0 %v750
        %795 = vmatprep.subr.bf16.mxu0 %v753
        %796 = vmatpush1.bf16.msra.mxu0 %v752
        %797 = vmatprep.subr.bf16.mxu0 %v755
        %798 = vmatpush1.bf16.msra.mxu0 %v754
        %799 = vmatprep.subr.bf16.mxu0 0
        %800 = vmatpush1.bf16.msra.mxu0 0
        %801 = vmatprep.subr.bf16.mxu0 0
        %802 = vmatpush1.bf16.msra.mxu0 0
        %803 = vmatprep.subr.bf16.mxu0 0
        %804 = vmatpush1.bf16.msra.mxu0 0
        %805 = vmatprep.subr.bf16.mxu0 0
        %806 = vmatpush1.bf16.msra.mxu0 0
        %807 = vmatprep.subr.bf16.mxu0 0
        %808 = vmatpush1.bf16.msra.mxu0 0
        %809 = vmatprep.subr.bf16.mxu0 0
        %810 = vmatpush1.bf16.msra.mxu0 0
        %811 = vmatprep.mubr.bf16.mxu0 %v777
        %812 = vmatmul.mubr.bf16.gmra.mrb[0].mxu0 %v673
        %v813 = vpop.f32.mrb[0].mxu0
        %v814 = vadd.f32 0.0, %v813
        %v815 = vpop.f32.mrb[0].mxu0
        %v816 = vadd.f32 0.0, %v815
        %v817 = vpop.f32.mrb[0].mxu0
        %v818 = vadd.f32 0.0, %v817
        %v819 = vpop.f32.mrb[0].mxu0
        %v820 = vadd.f32 0.0, %v819
        %821 = vdwg.mxu0
        %v822 = vadd.f32 %v644, %v814
        %v823 = vadd.f32 %v646, %v816
        %v824 = vadd.f32 %v648, %v818
        %v825 = vadd.f32 %v650, %v820
        %v826 = vld [vmem:[%s2] sm:$0x3]
        %v828 = vlaneseq
        %v829 = vshrl.u32 %v828, 7
        %v830 = vsub.s32 0, %v829
        %v831 = vrot.slane %v826, %v830
        %v832 = vlaneseq
        %v833 = vshrl.u32 %v832, 7
        %v834 = vsub.s32 1, %v833
        %v835 = vrot.slane %v826, %v834
        %v838 = vadd.f32 %v822, %v831
        %v839 = vadd.f32 %v823, %v835
        %v840 = vadd.f32 %v824, %v831
        %v841 = vadd.f32 %v825, %v835
        %s842 = sld [smem:[#allocation2]]
        %vm843 = vcmp.gt.f32.partialorder %v838, 0.0
        %vm844 = vcmp.gt.f32.partialorder %v839, 0.0
        %vm845 = vcmp.gt.f32.partialorder %v840, 0.0
        %vm846 = vcmp.gt.f32.partialorder %v841, 0.0
        %v847 = vstv %s842
        %v848 = vmul.f32 %v847, %v838
        %v849 = vmul.f32 %v847, %v839
        %v850 = vmul.f32 %v847, %v840
        %v851 = vmul.f32 %v847, %v841
        %v852 = vsel %vm843, %v838, %v848
        %v853 = vsel %vm844, %v839, %v849
        %v854 = vsel %vm845, %v840, %v850
        %v855 = vsel %vm846, %v841, %v851
        %v856 = vlaneseq
        %v857 = vshrl.u32 %v856, 7
        %v858 = vadd.s32 %v857, 8
        %v859 = vlaneseq
        %v860 = vand.u32 %v859, 127
        %v861 = vadd.s32 %v860, 128
        %s862 = smul.u32 %s26, 8
        %s863 = ssub.s32 %s862, 1
        %v864 = vstv %s863
        %v865 = vadd.s32 %v864, %v857
        %v866 = vadd.s32 %v864, %v858
        %vm867 = vcmp.ge.s32.totalorder %v865, 0
        %vm868 = vcmp.ge.s32.totalorder %v866, 0
        %vm869 = vcmp.lt.s32.totalorder %v865, 16
        %vm870 = vcmp.lt.s32.totalorder %v866, 16
        %vm871 = vmand %vm867, %vm869
        %vm872 = vmand %vm868, %vm870
        %vm873 = vcmp.ge.s32.totalorder %v860, 8
        %vm874 = vcmp.ge.s32.totalorder %v861, 8
        %vm875 = vmand %vm871, %vm873
        %vm876 = vmand %vm871, %vm874
        %vm877 = vmand %vm872, %vm873
        %vm878 = vmand %vm872, %vm874
        %vm879 = vcmp.lt.s32.totalorder %v860, 136
        %vm880 = vcmp.lt.s32.totalorder %v861, 136
        %vm881 = vmand %vm875, %vm879
        %vm882 = vmand %vm876, %vm880
        %vm883 = vmand %vm877, %vm879
        %vm884 = vmand %vm878, %vm880
        %v885 = vsel %vm881, %v852, 0.0
        %v886 = vsel %vm882, %v853, 0.0
        %v887 = vsel %vm883, %v854, 0.0
        %v888 = vsel %vm884, %v855, 0.0
        %v889 = vpack.c.bf16 %v887, %v885
        %v890 = vpack.c.bf16 %v888, %v886
        %v891 = vld [vmem:[%s3] sm:$0xf]
        %v892 = vld [vmem:[%s3 + $0x4] sm:$0xf]
        %v893 = vld [vmem:[%s3 + $0x8] sm:$0xf]
        %v894 = vld [vmem:[%s3 + $0xc] sm:$0xf]
        %v895 = vld [vmem:[%s3 + $0x10] sm:$0xf]
        %v896 = vld [vmem:[%s3 + $0x14] sm:$0xf]
        %v897 = vld [vmem:[%s3 + $0x18] sm:$0xf]
        %v898 = vld [vmem:[%s3 + $0x1c] sm:$0xf]
        %v899 = vld [vmem:[%s3 + $0x20] sm:$0xf]
        %v900 = vld [vmem:[%s3 + $0x24] sm:$0xf]
        %v901 = vld [vmem:[%s3 + $0x28] sm:$0xf]
        %v902 = vld [vmem:[%s3 + $0x2c] sm:$0xf]
        %v903 = vld [vmem:[%s3 + $0x30] sm:$0xf]
        %v904 = vld [vmem:[%s3 + $0x34] sm:$0xf]
        %v905 = vld [vmem:[%s3 + $0x38] sm:$0xf]
        %v906 = vld [vmem:[%s3 + $0x3c] sm:$0xf]
        %v907 = vld [vmem:[%s3 + $0x40] sm:$0xf]
        %v908 = vld [vmem:[%s3 + $0x44] sm:$0xf]
        %s909 = scalar_lea.vmem %s3, 72
        %v910 = vld [vmem:[%s909] sm:$0xf]
        %v911 = vld [vmem:[%s909 + $0x4] sm:$0xf]
        %v912 = vld [vmem:[%s909 + $0x8] sm:$0xf]
        %v913 = vld [vmem:[%s909 + $0xc] sm:$0xf]
        %v914 = vld [vmem:[%s909 + $0x10] sm:$0xf]
        %v915 = vld [vmem:[%s909 + $0x14] sm:$0xf]
        %v916 = vld [vmem:[%s909 + $0x18] sm:$0xf]
        %v917 = vld [vmem:[%s909 + $0x1c] sm:$0xf]
        %v918 = vld [vmem:[%s909 + $0x20] sm:$0xf]
        %v919 = vld [vmem:[%s909 + $0x24] sm:$0xf]
        %v920 = vld [vmem:[%s909 + $0x28] sm:$0xf]
        %v921 = vld [vmem:[%s909 + $0x2c] sm:$0xf]
        %v922 = vld [vmem:[%s909 + $0x30] sm:$0xf]
        %v923 = vld [vmem:[%s909 + $0x34] sm:$0xf]
        %v924 = vld [vmem:[%s909 + $0x38] sm:$0xf]
        %v925 = vld [vmem:[%s909 + $0x3c] sm:$0xf]
        %v926 = vld [vmem:[%s909 + $0x40] sm:$0xf]
        %v927 = vld [vmem:[%s909 + $0x44] sm:$0xf]
        %v929 = vshrl.u32 %v889, 16
        %v931 = vshll.u32 %v889, 16
        %v933 = vrot.slane %v931, 1
        %v934 = vor.u32 %v929, %v933
        %v936 = vshrl.u32 %v890, 16
        %v938 = vshll.u32 %v890, 16
        %v940 = vrot.slane %v938, 1
        %v941 = vor.u32 %v936, %v940
        %v961 = vunpack.c.l.b16 %v910
        %v962 = vunpack.c.l.b16 %v911
        %v963 = vunpack.c.l.b16 %v912
        %v964 = vunpack.c.l.b16 %v913
        %v965 = vunpack.c.l.b16 %v914
        %v966 = vunpack.c.l.b16 %v915
        %v967 = vunpack.c.l.b16 %v916
        %v968 = vunpack.c.l.b16 %v917
        %v969 = vunpack.c.l.b16 %v918
        %v970 = vunpack.c.l.b16 %v919
        %v971 = vunpack.c.l.b16 %v920
        %v972 = vunpack.c.l.b16 %v921
        %v973 = vunpack.c.l.b16 %v922
        %v974 = vunpack.c.l.b16 %v923
        %v975 = vunpack.c.l.b16 %v924
        %v976 = vunpack.c.l.b16 %v925
        %v977 = vunpack.c.l.b16 %v926
        %v978 = vunpack.c.l.b16 %v927
        %v979 = vpack.c.b16 %v962, %v961
        %v980 = vpack.c.b16 %v964, %v963
        %v981 = vpack.c.b16 %v966, %v965
        %v982 = vpack.c.b16 %v968, %v967
        %v983 = vpack.c.b16 %v970, %v969
        %v984 = vpack.c.b16 %v972, %v971
        %v985 = vpack.c.b16 %v974, %v973
        %v986 = vpack.c.b16 %v976, %v975
        %v987 = vpack.c.b16 %v978, %v977
        %vm997 = vcmask 130048
        %v999 = vsel %vm997, %v941, 0
        %1001 = vmatprep.subr.bf16.mxu0 0
        %1002 = vmatpush1.bf16.msra.mxu0 %v979
        %1003 = vmatprep.subr.bf16.mxu0 0
        %1004 = vmatpush1.bf16.msra.mxu0 %v980
        %1005 = vmatprep.subr.bf16.mxu0 0
        %1006 = vmatpush1.bf16.msra.mxu0 %v981
        %1007 = vmatprep.subr.bf16.mxu0 0
        %1008 = vmatpush1.bf16.msra.mxu0 %v982
        %1009 = vmatprep.subr.bf16.mxu0 0
        %1010 = vmatpush1.bf16.msra.mxu0 %v983
        %1011 = vmatprep.subr.bf16.mxu0 0
        %1012 = vmatpush1.bf16.msra.mxu0 %v984
        %1013 = vmatprep.subr.bf16.mxu0 0
        %1014 = vmatpush1.bf16.msra.mxu0 %v985
        %1015 = vmatprep.subr.bf16.mxu0 0
        %1016 = vmatpush1.bf16.msra.mxu0 %v986
        %1017 = vmatprep.subr.bf16.mxu0 0
        %1018 = vmatpush1.bf16.msra.mxu0 %v987
        %1019 = vmatprep.subr.bf16.mxu0 0
        %1020 = vmatpush1.bf16.msra.mxu0 0
        %1021 = vmatprep.subr.bf16.mxu0 0
        %1022 = vmatpush1.bf16.msra.mxu0 0
        %1023 = vmatprep.subr.bf16.mxu0 0
        %1024 = vmatpush1.bf16.msra.mxu0 0
        %1025 = vmatprep.subr.bf16.mxu0 0
        %1026 = vmatpush1.bf16.msra.mxu0 0
        %1027 = vmatprep.subr.bf16.mxu0 0
        %1028 = vmatpush1.bf16.msra.mxu0 0
        %1029 = vmatprep.subr.bf16.mxu0 0
        %1030 = vmatpush1.bf16.msra.mxu0 0
        %1031 = vmatprep.subr.bf16.mxu0 0
        %1032 = vmatpush1.bf16.msra.mxu0 0
        %1033 = vmatprep.mubr.bf16.mxu0 %v999
        %1034 = vmatmul.mubr.bf16.gmra.mrb[0].mxu0 %v934
        %v1035 = vpop.f32.mrb[0].mxu0
        %v1036 = vadd.f32 0.0, %v1035
        %v1037 = vpop.f32.mrb[0].mxu0
        %v1038 = vpop.f32.mrb[0].mxu0
        %v1039 = vpop.f32.mrb[0].mxu0
        %1040 = vdwg.mxu0
        %v1059 = vunpack.c.l.b16 %v891
        %v1060 = vunpack.c.l.b16 %v892
        %v1061 = vunpack.c.l.b16 %v893
        %v1062 = vunpack.c.l.b16 %v894
        %v1063 = vunpack.c.l.b16 %v895
        %v1064 = vunpack.c.l.b16 %v896
        %v1065 = vunpack.c.l.b16 %v897
        %v1066 = vunpack.c.l.b16 %v898
        %v1067 = vunpack.c.l.b16 %v899
        %v1068 = vunpack.c.l.b16 %v900
        %v1069 = vunpack.c.l.b16 %v901
        %v1070 = vunpack.c.l.b16 %v902
        %v1071 = vunpack.c.l.b16 %v903
        %v1072 = vunpack.c.l.b16 %v904
        %v1073 = vunpack.c.l.b16 %v905
        %v1074 = vunpack.c.l.b16 %v906
        %v1075 = vunpack.c.l.b16 %v907
        %v1076 = vunpack.c.l.b16 %v908
        %v1077 = vpack.c.b16 %v1060, %v1059
        %v1078 = vpack.c.b16 %v1062, %v1061
        %v1079 = vpack.c.b16 %v1064, %v1063
        %v1080 = vpack.c.b16 %v1066, %v1065
        %v1081 = vpack.c.b16 %v1068, %v1067
        %v1082 = vpack.c.b16 %v1070, %v1069
        %v1083 = vpack.c.b16 %v1072, %v1071
        %v1084 = vpack.c.b16 %v1074, %v1073
        %v1085 = vpack.c.b16 %v1076, %v1075
        %v1095 = vsel %vm997, %v890, 0
        %1097 = vmatprep.subr.bf16.mxu0 0
        %1098 = vmatpush1.bf16.msra.mxu0 %v1077
        %1099 = vmatprep.subr.bf16.mxu0 0
        %1100 = vmatpush1.bf16.msra.mxu0 %v1078
        %1101 = vmatprep.subr.bf16.mxu0 0
        %1102 = vmatpush1.bf16.msra.mxu0 %v1079
        %1103 = vmatprep.subr.bf16.mxu0 0
        %1104 = vmatpush1.bf16.msra.mxu0 %v1080
        %1105 = vmatprep.subr.bf16.mxu0 0
        %1106 = vmatpush1.bf16.msra.mxu0 %v1081
        %1107 = vmatprep.subr.bf16.mxu0 0
        %1108 = vmatpush1.bf16.msra.mxu0 %v1082
        %1109 = vmatprep.subr.bf16.mxu0 0
        %1110 = vmatpush1.bf16.msra.mxu0 %v1083
        %1111 = vmatprep.subr.bf16.mxu0 0
        %1112 = vmatpush1.bf16.msra.mxu0 %v1084
        %1113 = vmatprep.subr.bf16.mxu0 0
        %1114 = vmatpush1.bf16.msra.mxu0 %v1085
        %1115 = vmatprep.subr.bf16.mxu0 0
        %1116 = vmatpush1.bf16.msra.mxu0 0
        %1117 = vmatprep.subr.bf16.mxu0 0
        %1118 = vmatpush1.bf16.msra.mxu0 0
        %1119 = vmatprep.subr.bf16.mxu0 0
        %1120 = vmatpush1.bf16.msra.mxu0 0
        %1121 = vmatprep.subr.bf16.mxu0 0
        %1122 = vmatpush1.bf16.msra.mxu0 0
        %1123 = vmatprep.subr.bf16.mxu0 0
        %1124 = vmatpush1.bf16.msra.mxu0 0
        %1125 = vmatprep.subr.bf16.mxu0 0
        %1126 = vmatpush1.bf16.msra.mxu0 0
        %1127 = vmatprep.subr.bf16.mxu0 0
        %1128 = vmatpush1.bf16.msra.mxu0 0
        %1129 = vmatprep.mubr.bf16.mxu0 %v1095
        %1130 = vmatmul.mubr.bf16.gmra.mrb[0].mxu0 %v889
        %v1131 = vpop.f32.mrb[0].mxu0
        %v1132 = vadd.f32 %v1036, %v1131
        %v1133 = vpop.f32.mrb[0].mxu0
        %v1134 = vpop.f32.mrb[0].mxu0
        %v1135 = vpop.f32.mrb[0].mxu0
        %1136 = vdwg.mxu0
        %s1137 = scalar_lea.vmem %s3, 144
        %v1138 = vld [vmem:[%s1137] sm:$0xf]
        %v1139 = vld [vmem:[%s1137 + $0x4] sm:$0xf]
        %v1140 = vld [vmem:[%s1137 + $0x8] sm:$0xf]
        %v1141 = vld [vmem:[%s1137 + $0xc] sm:$0xf]
        %v1142 = vld [vmem:[%s1137 + $0x10] sm:$0xf]
        %v1143 = vld [vmem:[%s1137 + $0x14] sm:$0xf]
        %v1144 = vld [vmem:[%s1137 + $0x18] sm:$0xf]
        %v1145 = vld [vmem:[%s1137 + $0x1c] sm:$0xf]
        %v1146 = vld [vmem:[%s1137 + $0x20] sm:$0xf]
        %v1147 = vld [vmem:[%s1137 + $0x24] sm:$0xf]
        %v1148 = vld [vmem:[%s1137 + $0x28] sm:$0xf]
        %v1149 = vld [vmem:[%s1137 + $0x2c] sm:$0xf]
        %v1150 = vld [vmem:[%s1137 + $0x30] sm:$0xf]
        %v1151 = vld [vmem:[%s1137 + $0x34] sm:$0xf]
        %v1152 = vld [vmem:[%s1137 + $0x38] sm:$0xf]
        %v1153 = vld [vmem:[%s1137 + $0x3c] sm:$0xf]
        %v1154 = vld [vmem:[%s1137 + $0x40] sm:$0xf]
        %v1155 = vld [vmem:[%s1137 + $0x44] sm:$0xf]
        %v1158 = vrot.slane %v889, 1
        %v1159 = vrot.slane %v890, 1
        %v1179 = vunpack.c.l.b16 %v1138
        %v1180 = vunpack.c.l.b16 %v1139
        %v1181 = vunpack.c.l.b16 %v1140
        %v1182 = vunpack.c.l.b16 %v1141
        %v1183 = vunpack.c.l.b16 %v1142
        %v1184 = vunpack.c.l.b16 %v1143
        %v1185 = vunpack.c.l.b16 %v1144
        %v1186 = vunpack.c.l.b16 %v1145
        %v1187 = vunpack.c.l.b16 %v1146
        %v1188 = vunpack.c.l.b16 %v1147
        %v1189 = vunpack.c.l.b16 %v1148
        %v1190 = vunpack.c.l.b16 %v1149
        %v1191 = vunpack.c.l.b16 %v1150
        %v1192 = vunpack.c.l.b16 %v1151
        %v1193 = vunpack.c.l.b16 %v1152
        %v1194 = vunpack.c.l.b16 %v1153
        %v1195 = vunpack.c.l.b16 %v1154
        %v1196 = vunpack.c.l.b16 %v1155
        %v1197 = vpack.c.b16 %v1180, %v1179
        %v1198 = vpack.c.b16 %v1182, %v1181
        %v1199 = vpack.c.b16 %v1184, %v1183
        %v1200 = vpack.c.b16 %v1186, %v1185
        %v1201 = vpack.c.b16 %v1188, %v1187
        %v1202 = vpack.c.b16 %v1190, %v1189
        %v1203 = vpack.c.b16 %v1192, %v1191
        %v1204 = vpack.c.b16 %v1194, %v1193
        %v1205 = vpack.c.b16 %v1196, %v1195
        %v1216 = vsel %vm997, %v1159, 0
        %1218 = vmatprep.subr.bf16.mxu0 0
        %1219 = vmatpush1.bf16.msra.mxu0 %v1197
        %1220 = vmatprep.subr.bf16.mxu0 0
        %1221 = vmatpush1.bf16.msra.mxu0 %v1198
        %1222 = vmatprep.subr.bf16.mxu0 0
        %1223 = vmatpush1.bf16.msra.mxu0 %v1199
        %1224 = vmatprep.subr.bf16.mxu0 0
        %1225 = vmatpush1.bf16.msra.mxu0 %v1200
        %1226 = vmatprep.subr.bf16.mxu0 0
        %1227 = vmatpush1.bf16.msra.mxu0 %v1201
        %1228 = vmatprep.subr.bf16.mxu0 0
        %1229 = vmatpush1.bf16.msra.mxu0 %v1202
        %1230 = vmatprep.subr.bf16.mxu0 0
        %1231 = vmatpush1.bf16.msra.mxu0 %v1203
        %1232 = vmatprep.subr.bf16.mxu0 0
        %1233 = vmatpush1.bf16.msra.mxu0 %v1204
        %1234 = vmatprep.subr.bf16.mxu0 0
        %1235 = vmatpush1.bf16.msra.mxu0 %v1205
        %1236 = vmatprep.subr.bf16.mxu0 0
        %1237 = vmatpush1.bf16.msra.mxu0 0
        %1238 = vmatprep.subr.bf16.mxu0 0
        %1239 = vmatpush1.bf16.msra.mxu0 0
        %1240 = vmatprep.subr.bf16.mxu0 0
        %1241 = vmatpush1.bf16.msra.mxu0 0
        %1242 = vmatprep.subr.bf16.mxu0 0
        %1243 = vmatpush1.bf16.msra.mxu0 0
        %1244 = vmatprep.subr.bf16.mxu0 0
        %1245 = vmatpush1.bf16.msra.mxu0 0
        %1246 = vmatprep.subr.bf16.mxu0 0
        %1247 = vmatpush1.bf16.msra.mxu0 0
        %1248 = vmatprep.subr.bf16.mxu0 0
        %1249 = vmatpush1.bf16.msra.mxu0 0
        %1250 = vmatprep.mubr.bf16.mxu0 %v1216
        %1251 = vmatmul.mubr.bf16.gmra.mrb[0].mxu0 %v1158
        %v1252 = vpop.f32.mrb[0].mxu0
        %v1253 = vadd.f32 0.0, %v1252
        %v1254 = vpop.f32.mrb[0].mxu0
        %v1255 = vpop.f32.mrb[0].mxu0
        %v1256 = vpop.f32.mrb[0].mxu0
        %1257 = vdwg.mxu0
        %v1258 = vadd.f32 %v1132, %v1253
        %v1259 = vunpack.c.l.bf16 %v293
        %v1260 = vunpack.c.h.bf16 %v293
        %v1261 = vunpack.c.l.bf16 %v294
        %v1262 = vunpack.c.h.bf16 %v294
        %v1263 = vld [vmem:[%s4] sm:$0x1]
        %v1265 = vlaneseq
        %v1266 = vshrl.u32 %v1265, 7
        %v1267 = vsub.s32 0, %v1266
        %v1268 = vrot.slane %v1263, %v1267
        %v1270 = vadd.f32 %v1258, %v1268
        %vm1275 = vcmask 1045504
        %v1276 = vrot.slane %v1259, 2
        %v1277 = vrot.slane %v1261, 2
        %v1278 = vsel %vm1275, %v1276, %v1277
        %v1279 = vrot.slane %v1260, 2
        %v1280 = vrot.slane %v1262, 2
        %v1281 = vsel %vm1275, %v1279, %v1280
        %1282 = vrot.lane.b32.xlu0 %v1278, 112
        %v1283 = vpop.permute.xlu0 %1282
        %1284 = vrot.lane.b32.xlu0 %v1281, 112
        %v1285 = vpop.permute.xlu0 %1284
        %vm1286 = vcmask 916480
        %v1287 = vsel %vm1286, %v1283, %v1285
        %v1289 = vadd.f32 %v1270, %v1287
        %s1290 = sld [smem:[#allocation2 + $0x1]]
        %vm1291 = vcmp.gt.f32.partialorder %v1289, 0.0
        %v1292 = vstv %s1290
        %v1293 = vmul.f32 %v1292, %v1289
        %v1294 = vsel %vm1291, %v1289, %v1293
        %1295 = vst [vmem:[%s282] sm:$0xff] %v1294
        %s1296 = sand.u32 %s176, 1
        %s1297 = scalar_lea.sflag [#allocation3], %s1296
        %s1298 = sand.u32 %s176, 1
        %s1299 = smul.addr %s1298, 8
        %s1300 = scalar_lea.vmem [#allocation5], %s1299
        // Predicated region
        $region49: #{tpu_custom_call.1} parent=43 // pred_check
          %p1301 = pneg %p186
        $region50: #{tpu_custom_call.1} parent=43 // pred_check_branch
          %1303 = sbr.rel (%p1301) target = $region52
        $region51: #{tpu_custom_call.1} parent=43 // pred_region
          %s1305 = ssub.s32 128, 128
          %1306 = vsyncadd %s1297, %s1305
          %s1307 = smul.addr %s25, 2
          %s1308 = sadd.s32 %s26, %s1307
          %s1309 = smul.addr %s1308, 128
          %s1310 = scalar_lea.hbm %s6, %s1309
          %s1312 = sshll.u32 %s1300, 4
          %s1313 = int_to_ptr.vmem [resolvable:$true] %s1312
          %1315 = dma.vmem_to_hbm [thread:$0]  %s1313, 128, %s1310, %s1297
        $region52: #{tpu_custom_call.1} parent=43 // pred_fallthru
          _
      $region44: #{tpu_custom_call.1} parent=5 // pred_fallthru
        _
      %p1316 = scmp.le.s32.totalorder 2, %s16
      // Predicated region
      $region53: #{tpu_custom_call.1} parent=5 // pred_check
        %p1317 = pneg %p1316
      $region54: #{tpu_custom_call.1} parent=5 // pred_check_branch
        %1319 = sbr.rel (%p1317) target = $region56
      $region55: #{tpu_custom_call.1} parent=5 // pred_region
        %s1320 = ssub.s32 %s16, 2
        // Predicated region
        $region57: #{tpu_custom_call.1} parent=55 // pred_check
          %p1321 = pneg %p192
        $region58: #{tpu_custom_call.1} parent=55 // pred_check_branch
          %1323 = sbr.rel (%p1321) target = $region60
        $region59: #{tpu_custom_call.1} parent=55 // pred_region
          %s1324 = sand.u32 %s177, 1
          %s1325 = scalar_lea.sflag [#allocation3], %s1324
          %s1326 = sand.u32 %s177, 1
          %s1327 = smul.addr %s1326, 8
          %s1328 = scalar_lea.vmem [#allocation5], %s1327
          %1329 = dma.done %s1325, 128
        $region60: #{tpu_custom_call.1} parent=55 // pred_fallthru
          _
      $region56: #{tpu_custom_call.1} parent=5 // pred_fallthru
        _
    $region6: #{tpu_custom_call.1} parent=1 // loop_footer
      %s20 = sadd.s32 1, %s16
    $region7: #{tpu_custom_call.1} parent=1 // loop_footer_branch
      %15 = sbr.rel target = $region3
    $region8: #{tpu_custom_call.1} parent=1 // loop_exit
      _
    %1330 = vsyncpa [#allocation3], 1
    %s1331 = scalar_lea.sflag [#allocation3], 1
    %1332 = vsyncpa %s1331, 1
    %1333 = vsyncpa [#allocation4], 1
    %s1334 = scalar_lea.sflag [#allocation4], 1
    %1335 = vsyncpa %s1334, 1

</llo_original>
